<compile_context>
chip_gen: v5e
topology: v5e:2x2
jax: 0.10.0
libtpu: 0.0.40
codegen_flags: <defaults>
</compile_context>

<pallas_src>
import math

import jax
import jax.numpy as jnp
from jax.experimental import pallas as pl
from jax.experimental.pallas import tpu as pltpu


def pinn_kernel(x_ref, t_ref,
                w1x_ref, w1t_ref, b1_ref,
                w2_ref, b2_ref,
                w3_ref, b3_ref,
                w4_ref, b4_ref,
                out_ref):
    # Feature-major activations: (features, tile_n); tile_n is lane-dense.
    x = x_ref[...]                      # (1, tile_n)
    t = t_ref[...]                      # (1, tile_n)

    # Layer 1 with the concat fused in: W1 @ [x; t] + b1
    #   = W1[:, :1] (outer) x + W1[:, 1:] (outer) t + b1
    # K=2 outer products -> cheap VPU broadcast-multiplies, no MXU needed.
    h = w1x_ref[...] * x + w1t_ref[...] * t + b1_ref[...]     # (H, tile_n)
    h = jnp.tanh(h)

    # Layers 2 & 3: (H, H) @ (H, tile_n) on the MXU, bias lane-broadcast.
    h = jnp.tanh(jnp.dot(w2_ref[...], h,
                         preferred_element_type=jnp.float32) + b2_ref[...])
    h = jnp.tanh(jnp.dot(w3_ref[...], h,
                         preferred_element_type=jnp.float32) + b3_ref[...])

    # Layer 4: (out_dim, H) @ (H, tile_n) -> (out_dim, tile_n), lane-dense store.
    o = jnp.dot(w4_ref[...], h, preferred_element_type=jnp.float32) + b4_ref[...]
    out_ref[...] = o.astype(out_ref.dtype)


def _round_up(n, m):
    return ((n + m - 1) // m) * m


def pinn_forward(x, t, params, *, tile_n=16384):
    """x: (N, 1), t: (N, 1)  ->  (N, output_size), matching PyTorch PINN.forward.

    params: tuple of 4 (weight, bias) pairs in PyTorch layout:
            weight (out_features, in_features), bias (out_features,).
    """
    assert x.ndim == 2 and t.ndim == 2 and x.shape == t.shape and x.shape[1] == 1
    N = x.shape[0]
    (w1, b1), (w2, b2), (w3, b3), (w4, b4) = params
    hidden = w1.shape[0]
    out_dim = w4.shape[0]
    assert w1.shape[1] == 2, "PINN first layer expects concat([x, t]) -> 2 features"

    dtype = x.dtype

    # Lane-dense batch tiling: tile_n must be a multiple of 128.
    cols = _round_up(max(N, 1), 128)
    tile_n = max(128, _round_up(min(tile_n, cols), 128))
    # Keep >= 2 grid steps when there is enough work so the "parallel" grid
    # axis can shard steps across v7x's two TensorCores.
    if cols <= tile_n and cols > 128:
        tile_n = _round_up(pl.cdiv(cols, 2), 128)
    assert tile_n % 128 == 0
    grid = (pl.cdiv(N, tile_n),)

    # Rough per-step VMEM need: double-buffered x/t/out blocks plus ~3 live
    # (H, tile_n) f32 intermediates.  Raise the scoped-VMEM cap accordingly
    # (stays well under 64 MiB physical on v7x, 128 MiB on v5e/v6e).
    est_bytes = 4 * tile_n * (3 * hidden + 6)
    vmem_limit = int(min(56 * 1024 * 1024, max(32 * 1024 * 1024, 2 * est_bytes)))

    # Feature-major views of the batch: (N, 1) -> (1, N) is a pure reshape
    # (same memory order, no HBM copy).  NO padding: Pallas handles the
    # ragged last block itself (masked output writeback, column-local garbage
    # in over-read input columns).
    x_fm = x.reshape(1, N)
    t_fm = t.reshape(1, N)

    # Split W1 so the x/t concat fuses into the kernel; biases as (out, 1) cols.
    w1x = w1[:, 0:1]                    # (H, 1)
    w1t = w1[:, 1:2]                    # (H, 1)
    col = lambda b: b.reshape(-1, 1)    # (out,) -> (out, 1)

    # Weights/biases are tiny, full, and grid-invariant (constant index_map),
    # so Pallas keeps them resident across grid steps.
    full = lambda a: pl.BlockSpec(a.shape, lambda i: (0, 0))

    out_fm = pl.pallas_call(
        pinn_kernel,
        out_shape=jax.ShapeDtypeStruct((out_dim, N), dtype),
        grid_spec=pltpu.PrefetchScalarGridSpec(
            num_scalar_prefetch=0,
            grid=grid,
            in_specs=[
                pl.BlockSpec((1, tile_n), lambda i: (0, i)),   # x  (1, N)
                pl.BlockSpec((1, tile_n), lambda i: (0, i)),   # t  (1, N)
                full(w1x), full(w1t), full(col(b1)),
                full(w2), full(col(b2)),
                full(w3), full(col(b3)),
                full(w4), full(col(b4)),
            ],
            out_specs=pl.BlockSpec((out_dim, tile_n), lambda i: (0, i)),
        ),
        compiler_params=pltpu.CompilerParams(
            dimension_semantics=("parallel",),
            vmem_limit_bytes=vmem_limit),
    )(x_fm, t_fm, w1x, w1t, col(b1), w2, col(b2), w3, col(b3), w4, col(b4))

    if out_dim == 1:
        # (1, N) -> (N, 1): identical memory order, so this is a free reshape.
        return out_fm.reshape(N, 1)
    # TODO(synk): for out_dim > 1 this .T is a real HBM transpose; if it ever
    # matters, emit row-major from the kernel or keep feature-major downstream.
    return out_fm.T


def init_linear(key, in_features, out_features, dtype=jnp.float32):
    """Deterministic init mimicking nn.Linear's U(-1/sqrt(in), 1/sqrt(in)).
    Weight kept in PyTorch layout (out_features, in_features)."""
    kw, kb = jax.random.split(key)
    bound = 1.0 / math.sqrt(in_features)
    w = jax.random.uniform(kw, (out_features, in_features), dtype,
                           minval=-bound, maxval=bound)
    b = jax.random.uniform(kb, (out_features,), dtype,
                           minval=-bound, maxval=bound)
    return w, b


def _reference(x, t, params):
    """Pure-JAX reference of the same math (PyTorch semantics)."""
    h = jnp.concatenate([x, t], axis=1)
    for i, (w, b) in enumerate(params):
        h = jnp.dot(h, w.T, precision=jax.lax.Precision.HIGHEST) + b
        if i < 3:
            h = jnp.tanh(h)
    return h


if __name__ == "__main__":
    # PINN(input_size=2, hidden_size=32, output_size=1); x and t each (N, 1)
    input_size, hidden_size, output_size = 2, 32, 1

    key = jax.random.PRNGKey(0)
    k1, k2, k3, k4 = jax.random.split(key, 4)

    params = (
        init_linear(k1, input_size, hidden_size),
        init_linear(k2, hidden_size, hidden_size),
        init_linear(k3, hidden_size, hidden_size),
        init_linear(k4, hidden_size, output_size),
    )

    # Check both the tiny ragged case (one masked 128-wide tile) and a
    # multi-step pipelined grid (1024 rows -> 2 steps of 512).
    for N in (8, 1024):
        kx, kt = jax.random.split(jax.random.fold_in(key, N))
        x = jax.random.normal(kx, (N, 1), jnp.float32)
        t = jax.random.normal(kt, (N, 1), jnp.float32)

        out = jax.block_until_ready(pinn_forward(x, t, params))
        ref = _reference(x, t, params)

        assert out.shape == (N, output_size)
        # Tolerance accounts for MXU f32 rounding / EUP tanh approximation vs
        # the HIGHEST-precision XLA reference; real layout/weight bugs are >1e-2.
        err = float(jnp.max(jnp.abs(out - ref)))
        assert err < 1e-4, f"mismatch at N={N}: max abs err {err}"

    print("KERNEL_OK")
</pallas_src>

<mosaic_0001>
module attributes {stable_mosaic.version = 11 : i64} {
  func.func @pinn_kernel(%arg0: i32, %arg1: memref<1x128xf32, #tpu.memory_space<vmem>>, %arg2: memref<1x128xf32, #tpu.memory_space<vmem>>, %arg3: memref<32x1xf32, #tpu.memory_space<vmem>>, %arg4: memref<32x1xf32, #tpu.memory_space<vmem>>, %arg5: memref<32x1xf32, #tpu.memory_space<vmem>>, %arg6: memref<32x32xf32, #tpu.memory_space<vmem>>, %arg7: memref<32x1xf32, #tpu.memory_space<vmem>>, %arg8: memref<32x32xf32, #tpu.memory_space<vmem>>, %arg9: memref<32x1xf32, #tpu.memory_space<vmem>>, %arg10: memref<1x32xf32, #tpu.memory_space<vmem>>, %arg11: memref<1x1xf32, #tpu.memory_space<vmem>>, %arg12: memref<1x128xf32, #tpu.memory_space<vmem>>) attributes {dimension_semantics = [#tpu.dimension_semantics<parallel>], iteration_bounds = array<i64: 1>, scalar_prefetch = 0 : i64, scratch_operands = 0 : i64, tpu.core_type = #tpu.core_type<tc>, window_params = [{transform_indices = @transform_0, window_bounds = array<i64: 1, 128>}, {transform_indices = @transform_1, window_bounds = array<i64: 1, 128>}, {pipeline_mode = #tpu.pipeline_mode<synchronous>, transform_indices = @transform_2, window_bounds = array<i64: 32, 1>}, {pipeline_mode = #tpu.pipeline_mode<synchronous>, transform_indices = @transform_3, window_bounds = array<i64: 32, 1>}, {pipeline_mode = #tpu.pipeline_mode<synchronous>, transform_indices = @transform_4, window_bounds = array<i64: 32, 1>}, {pipeline_mode = #tpu.pipeline_mode<synchronous>, transform_indices = @transform_5, window_bounds = array<i64: 32, 32>}, {pipeline_mode = #tpu.pipeline_mode<synchronous>, transform_indices = @transform_6, window_bounds = array<i64: 32, 1>}, {pipeline_mode = #tpu.pipeline_mode<synchronous>, transform_indices = @transform_7, window_bounds = array<i64: 32, 32>}, {pipeline_mode = #tpu.pipeline_mode<synchronous>, transform_indices = @transform_8, window_bounds = array<i64: 32, 1>}, {pipeline_mode = #tpu.pipeline_mode<synchronous>, transform_indices = @transform_9, window_bounds = array<i64: 1, 32>}, {pipeline_mode = #tpu.pipeline_mode<synchronous>, transform_indices = @transform_10, window_bounds = array<i64: 1, 1>}, {transform_indices = @transform_11, window_bounds = array<i64: 1, 128>}]} {
    %c0 = arith.constant 0 : index
    %c0_0 = arith.constant 0 : index
    %0 = vector.load %arg1[%c0, %c0_0] : memref<1x128xf32, #tpu.memory_space<vmem>>, vector<1x128xf32>
    %c0_1 = arith.constant 0 : index
    %c0_2 = arith.constant 0 : index
    %1 = vector.load %arg2[%c0_1, %c0_2] : memref<1x128xf32, #tpu.memory_space<vmem>>, vector<1x128xf32>
    %c0_3 = arith.constant 0 : index
    %c0_4 = arith.constant 0 : index
    %2 = vector.load %arg3[%c0_3, %c0_4] : memref<32x1xf32, #tpu.memory_space<vmem>>, vector<32x1xf32>
    %3 = vector.broadcast %2 : vector<32x1xf32> to vector<32x128xf32>
    %4 = vector.broadcast %0 : vector<1x128xf32> to vector<32x128xf32>
    %5 = arith.mulf %3, %4 : vector<32x128xf32>
    %c0_5 = arith.constant 0 : index
    %c0_6 = arith.constant 0 : index
    %6 = vector.load %arg4[%c0_5, %c0_6] : memref<32x1xf32, #tpu.memory_space<vmem>>, vector<32x1xf32>
    %7 = vector.broadcast %6 : vector<32x1xf32> to vector<32x128xf32>
    %8 = vector.broadcast %1 : vector<1x128xf32> to vector<32x128xf32>
    %9 = arith.mulf %7, %8 : vector<32x128xf32>
    %10 = arith.addf %5, %9 : vector<32x128xf32>
    %c0_7 = arith.constant 0 : index
    %c0_8 = arith.constant 0 : index
    %11 = vector.load %arg5[%c0_7, %c0_8] : memref<32x1xf32, #tpu.memory_space<vmem>>, vector<32x1xf32>
    %12 = vector.broadcast %11 : vector<32x1xf32> to vector<32x128xf32>
    %13 = arith.addf %10, %12 : vector<32x128xf32>
    %14 = math.tanh %13 : vector<32x128xf32>
    %c0_9 = arith.constant 0 : index
    %c0_10 = arith.constant 0 : index
    %15 = vector.load %arg6[%c0_9, %c0_10] : memref<32x32xf32, #tpu.memory_space<vmem>>, vector<32x32xf32>
    %cst = arith.constant dense<0.000000e+00> : vector<32x128xf32>
    %16 = tpu.matmul %15, %14, %cst {dimension_numbers = #tpu.dot_dimension_numbers<[1], [0], [0], [1], [0, 0, 1, 1], [], []>} : vector<32x32xf32>, vector<32x128xf32>, vector<32x128xf32> -> vector<32x128xf32>
    %c0_11 = arith.constant 0 : index
    %c0_12 = arith.constant 0 : index
    %17 = vector.load %arg7[%c0_11, %c0_12] : memref<32x1xf32, #tpu.memory_space<vmem>>, vector<32x1xf32>
    %18 = vector.broadcast %17 : vector<32x1xf32> to vector<32x128xf32>
    %19 = arith.addf %16, %18 : vector<32x128xf32>
    %20 = math.tanh %19 : vector<32x128xf32>
    %c0_13 = arith.constant 0 : index
    %c0_14 = arith.constant 0 : index
    %21 = vector.load %arg8[%c0_13, %c0_14] : memref<32x32xf32, #tpu.memory_space<vmem>>, vector<32x32xf32>
    %cst_15 = arith.constant dense<0.000000e+00> : vector<32x128xf32>
    %22 = tpu.matmul %21, %20, %cst_15 {dimension_numbers = #tpu.dot_dimension_numbers<[1], [0], [0], [1], [0, 0, 1, 1], [], []>} : vector<32x32xf32>, vector<32x128xf32>, vector<32x128xf32> -> vector<32x128xf32>
    %c0_16 = arith.constant 0 : index
    %c0_17 = arith.constant 0 : index
    %23 = vector.load %arg9[%c0_16, %c0_17] : memref<32x1xf32, #tpu.memory_space<vmem>>, vector<32x1xf32>
    %24 = vector.broadcast %23 : vector<32x1xf32> to vector<32x128xf32>
    %25 = arith.addf %22, %24 : vector<32x128xf32>
    %26 = math.tanh %25 : vector<32x128xf32>
    %c0_18 = arith.constant 0 : index
    %c0_19 = arith.constant 0 : index
    %27 = vector.load %arg10[%c0_18, %c0_19] : memref<1x32xf32, #tpu.memory_space<vmem>>, vector<1x32xf32>
    %cst_20 = arith.constant dense<0.000000e+00> : vector<1x128xf32>
    %28 = tpu.matmul %27, %26, %cst_20 {dimension_numbers = #tpu.dot_dimension_numbers<[1], [0], [0], [1], [0, 0, 1, 1], [], []>} : vector<1x32xf32>, vector<32x128xf32>, vector<1x128xf32> -> vector<1x128xf32>
    %c0_21 = arith.constant 0 : index
    %c0_22 = arith.constant 0 : index
    %29 = vector.load %arg11[%c0_21, %c0_22] : memref<1x1xf32, #tpu.memory_space<vmem>>, vector<1x1xf32>
    %30 = vector.broadcast %29 : vector<1x1xf32> to vector<1x128xf32>
    %31 = arith.addf %28, %30 : vector<1x128xf32>
    %c0_23 = arith.constant 0 : index
    %c0_24 = arith.constant 0 : index
    %32 = vector.load %arg12[%c0_23, %c0_24] : memref<1x128xf32, #tpu.memory_space<vmem>>, vector<1x128xf32>
    tpu.vector_store %arg12[%c0_23, %c0_24], %31 {strides = array<i32>} : memref<1x128xf32, #tpu.memory_space<vmem>>, vector<1x128xf32>,
    return
  }
  func.func @transform_0(%arg0: i32) -> (i32, i32) {
    %c0_i32 = arith.constant 0 : i32
    %c0_i32_0 = arith.constant 0 : i32
    return %c0_i32, %arg0 : i32, i32
  }
  func.func @transform_1(%arg0: i32) -> (i32, i32) {
    %c0_i32 = arith.constant 0 : i32
    %c0_i32_0 = arith.constant 0 : i32
    return %c0_i32, %arg0 : i32, i32
  }
  func.func @transform_2(%arg0: i32) -> (i32, i32) {
    %c0_i32 = arith.constant 0 : i32
    %c0_i32_0 = arith.constant 0 : i32
    %c0_i32_1 = arith.constant 0 : i32
    return %c0_i32, %c0_i32_0 : i32, i32
  }
  func.func @transform_3(%arg0: i32) -> (i32, i32) {
    %c0_i32 = arith.constant 0 : i32
    %c0_i32_0 = arith.constant 0 : i32
    %c0_i32_1 = arith.constant 0 : i32
    return %c0_i32, %c0_i32_0 : i32, i32
  }
  func.func @transform_4(%arg0: i32) -> (i32, i32) {
    %c0_i32 = arith.constant 0 : i32
    %c0_i32_0 = arith.constant 0 : i32
    %c0_i32_1 = arith.constant 0 : i32
    return %c0_i32, %c0_i32_0 : i32, i32
  }
  func.func @transform_5(%arg0: i32) -> (i32, i32) {
    %c0_i32 = arith.constant 0 : i32
    %c0_i32_0 = arith.constant 0 : i32
    %c0_i32_1 = arith.constant 0 : i32
    return %c0_i32, %c0_i32_0 : i32, i32
  }
  func.func @transform_6(%arg0: i32) -> (i32, i32) {
    %c0_i32 = arith.constant 0 : i32
    %c0_i32_0 = arith.constant 0 : i32
    %c0_i32_1 = arith.constant 0 : i32
    return %c0_i32, %c0_i32_0 : i32, i32
  }
  func.func @transform_7(%arg0: i32) -> (i32, i32) {
    %c0_i32 = arith.constant 0 : i32
    %c0_i32_0 = arith.constant 0 : i32
    %c0_i32_1 = arith.constant 0 : i32
    return %c0_i32, %c0_i32_0 : i32, i32
  }
  func.func @transform_8(%arg0: i32) -> (i32, i32) {
    %c0_i32 = arith.constant 0 : i32
    %c0_i32_0 = arith.constant 0 : i32
    %c0_i32_1 = arith.constant 0 : i32
    return %c0_i32, %c0_i32_0 : i32, i32
  }
  func.func @transform_9(%arg0: i32) -> (i32, i32) {
    %c0_i32 = arith.constant 0 : i32
    %c0_i32_0 = arith.constant 0 : i32
    %c0_i32_1 = arith.constant 0 : i32
    return %c0_i32, %c0_i32_0 : i32, i32
  }
  func.func @transform_10(%arg0: i32) -> (i32, i32) {
    %c0_i32 = arith.constant 0 : i32
    %c0_i32_0 = arith.constant 0 : i32
    %c0_i32_1 = arith.constant 0 : i32
    return %c0_i32, %c0_i32_0 : i32, i32
  }
  func.func @transform_11(%arg0: i32) -> (i32, i32) {
    %c0_i32 = arith.constant 0 : i32
    %c0_i32_0 = arith.constant 0 : i32
    return %c0_i32, %arg0 : i32, i32
  }
}

</mosaic_0001>

<llo_original>
// kernel: tpu_custom_call.1
$region0: #{tpu_custom_call.1}
  #allocation0 [shape = 'u32[]', space=smem, size = 0x4, offset = 0x4, fixed_abs, tag = 'smem constant byte address 0x4 - core index']
  #allocation1 [shape = 'u32[72,128]{1,0:T(1,128)}', space=vmem, size = 0x9000, scoped, tag = 'internal scratch']
  #allocation2 [shape = 'f32[1,1]{1,0:T(1,128)S(1)}', space=vmem, size = 0x200, scoped, tag = 'scoped memory for tpu_custom_call.1']
  %s0 = inlined_call_operand.vmem [shape: f32[1,8], index: 0, kind: input, shape index: {}]
  %s1 = inlined_call_operand.vmem [shape: f32[1,8], index: 1, kind: input, shape index: {}]
  %s2 = inlined_call_operand.vmem [shape: f32[32,1], index: 2, kind: input, shape index: {}]
  %s3 = inlined_call_operand.vmem [shape: f32[32,1], index: 3, kind: input, shape index: {}]
  %s4 = inlined_call_operand.vmem [shape: f32[32,1], index: 4, kind: input, shape index: {}]
  %s5 = inlined_call_operand.vmem [shape: f32[32,32], index: 5, kind: input, shape index: {}]
  %s6 = inlined_call_operand.vmem [shape: f32[32,1], index: 6, kind: input, shape index: {}]
  %s7 = inlined_call_operand.vmem [shape: f32[32,32], index: 7, kind: input, shape index: {}]
  %s8 = inlined_call_operand.vmem [shape: f32[32,1], index: 8, kind: input, shape index: {}]
  %s9 = inlined_call_operand.vmem [shape: f32[1,32], index: 9, kind: input, shape index: {}]
  %s10 = inlined_call_operand.<no memory space> [shape: f32[1,1], index: 10, kind: input, shape index: {}]
  %s11 = inlined_call_operand.hbm [shape: f32[1,8], index: 11, kind: output, shape index: {}]
  %s12 = sld [smem:[#allocation0]]
  $region54: #{tpu_custom_call.1} parent=0
    _
  %s14 = ssub.s32 1, %s12
  %s15 = scalar_select 0, %s14, %s12
  %v16 = vstv %s10
  %17 = vst [vmem:[#allocation2] sm:$0x1] %v16
  $region1: #{tpu_custom_call.1} parent=0
    #allocation3 [shape = 'u8[512]{0}', space=vmem, size = 0x400, scoped, tag = 'output window, operand 0, single buffered']
    #allocation4 [shape = 's32[1]{0}', space=sflag, size = 0x4, scoped, tag = 'scoped memory for tpu_custom_call.1']
    %18 = vsyncpa [#allocation4], 0
    // Predicated region
    $region2: #{tpu_custom_call.1} parent=1 // pred_check
      _
    $region3: #{tpu_custom_call.1} parent=1 // pred_check_branch
      %20 = sbr.rel (0) target = $region5
    $region4: #{tpu_custom_call.1} parent=1 // pred_region
      _
    $region5: #{tpu_custom_call.1} parent=1 // pred_fallthru
      _
    // Predicated region
    $region6: #{tpu_custom_call.1} parent=1 // pred_check
      _
    $region7: #{tpu_custom_call.1} parent=1 // pred_check_branch
      %22 = sbr.rel (0) target = $region9
    $region8: #{tpu_custom_call.1} parent=1 // pred_region
      _
    $region9: #{tpu_custom_call.1} parent=1 // pred_fallthru
      _
    // Predicated region
    $region10: #{tpu_custom_call.1} parent=1 // pred_check
      _
    $region11: #{tpu_custom_call.1} parent=1 // pred_check_branch
      %24 = sbr.rel (0) target = $region13
    $region12: #{tpu_custom_call.1} parent=1 // pred_region
      _
    $region13: #{tpu_custom_call.1} parent=1 // pred_fallthru
      _
    // Predicated region
    $region14: #{tpu_custom_call.1} parent=1 // pred_check
      _
    $region15: #{tpu_custom_call.1} parent=1 // pred_check_branch
      %26 = sbr.rel (0) target = $region17
    $region16: #{tpu_custom_call.1} parent=1 // pred_region
      _
    $region17: #{tpu_custom_call.1} parent=1 // pred_fallthru
      _
    // Predicated region
    $region18: #{tpu_custom_call.1} parent=1 // pred_check
      _
    $region19: #{tpu_custom_call.1} parent=1 // pred_check_branch
      %28 = sbr.rel (0) target = $region21
    $region20: #{tpu_custom_call.1} parent=1 // pred_region
      _
    $region21: #{tpu_custom_call.1} parent=1 // pred_fallthru
      _
    // Predicated region
    $region22: #{tpu_custom_call.1} parent=1 // pred_check
      _
    $region23: #{tpu_custom_call.1} parent=1 // pred_check_branch
      %30 = sbr.rel (0) target = $region25
    $region24: #{tpu_custom_call.1} parent=1 // pred_region
      _
    $region25: #{tpu_custom_call.1} parent=1 // pred_fallthru
      _
    // Predicated region
    $region26: #{tpu_custom_call.1} parent=1 // pred_check
      _
    $region27: #{tpu_custom_call.1} parent=1 // pred_check_branch
      %32 = sbr.rel (0) target = $region29
    $region28: #{tpu_custom_call.1} parent=1 // pred_region
      _
    $region29: #{tpu_custom_call.1} parent=1 // pred_fallthru
      _
    // Predicated region
    $region30: #{tpu_custom_call.1} parent=1 // pred_check
      _
    $region31: #{tpu_custom_call.1} parent=1 // pred_check_branch
      %34 = sbr.rel (0) target = $region33
    $region32: #{tpu_custom_call.1} parent=1 // pred_region
      _
    $region33: #{tpu_custom_call.1} parent=1 // pred_fallthru
      _
    // Predicated region
    $region34: #{tpu_custom_call.1} parent=1 // pred_check
      _
    $region35: #{tpu_custom_call.1} parent=1 // pred_check_branch
      %36 = sbr.rel (0) target = $region37
    $region36: #{tpu_custom_call.1} parent=1 // pred_region
      _
    $region37: #{tpu_custom_call.1} parent=1 // pred_fallthru
      _
    // Predicated region
    $region38: #{tpu_custom_call.1} parent=1 // pred_check
      _
    $region39: #{tpu_custom_call.1} parent=1 // pred_check_branch
      %38 = sbr.rel (0) target = $region41
    $region40: #{tpu_custom_call.1} parent=1 // pred_region
      _
    $region41: #{tpu_custom_call.1} parent=1 // pred_fallthru
      _
    // Predicated region
    $region42: #{tpu_custom_call.1} parent=1 // pred_check
      _
    $region43: #{tpu_custom_call.1} parent=1 // pred_check_branch
      %40 = sbr.rel (0) target = $region45
    $region44: #{tpu_custom_call.1} parent=1 // pred_region
      _
    $region45: #{tpu_custom_call.1} parent=1 // pred_fallthru
      _
    %v41 = vld [vmem:[%s0] sm:$0x1]
    %v42 = vld [vmem:[%s1] sm:$0x1]
    %v43 = vld [vmem:[%s2] sm:$0xff]
    %v44 = vld [vmem:[%s2 + $0x8] sm:$0xff]
    %v45 = vld [vmem:[%s2 + $0x10] sm:$0xff]
    %v46 = vld [vmem:[%s2 + $0x18] sm:$0xff]
    %48 = vset.pattern.permute.xlu0 0
    %49 = vperm.xlu0 %48, %v43
    %v50 = vpop.permute.xlu0 %49
    %53 = vset.pattern.permute.xlu0 0
    %54 = vperm.xlu0 %53, %v44
    %v55 = vpop.permute.xlu0 %54
    %58 = vset.pattern.permute.xlu0 0
    %59 = vperm.xlu0 %58, %v45
    %v60 = vpop.permute.xlu0 %59
    %63 = vset.pattern.permute.xlu0 0
    %64 = vperm.xlu0 %63, %v46
    %v65 = vpop.permute.xlu0 %64
    %v68 = vperm.slane %v41, 0
    %v70 = vmul.f32 %v50, %v68
    %v71 = vmul.f32 %v55, %v68
    %v72 = vmul.f32 %v60, %v68
    %v73 = vmul.f32 %v65, %v68
    %v74 = vld [vmem:[%s3] sm:$0xff]
    %v75 = vld [vmem:[%s3 + $0x8] sm:$0xff]
    %v76 = vld [vmem:[%s3 + $0x10] sm:$0xff]
    %v77 = vld [vmem:[%s3 + $0x18] sm:$0xff]
    %79 = vset.pattern.permute.xlu0 0
    %80 = vperm.xlu0 %79, %v74
    %v81 = vpop.permute.xlu0 %80
    %84 = vset.pattern.permute.xlu0 0
    %85 = vperm.xlu0 %84, %v75
    %v86 = vpop.permute.xlu0 %85
    %89 = vset.pattern.permute.xlu0 0
    %90 = vperm.xlu0 %89, %v76
    %v91 = vpop.permute.xlu0 %90
    %94 = vset.pattern.permute.xlu0 0
    %95 = vperm.xlu0 %94, %v77
    %v96 = vpop.permute.xlu0 %95
    %v99 = vperm.slane %v42, 0
    %v101 = vmul.f32 %v81, %v99
    %v102 = vmul.f32 %v86, %v99
    %v103 = vmul.f32 %v91, %v99
    %v104 = vmul.f32 %v96, %v99
    %v105 = vadd.f32 %v70, %v101
    %v106 = vadd.f32 %v71, %v102
    %v107 = vadd.f32 %v72, %v103
    %v108 = vadd.f32 %v73, %v104
    %v109 = vld [vmem:[%s4] sm:$0xff]
    %v110 = vld [vmem:[%s4 + $0x8] sm:$0xff]
    %v111 = vld [vmem:[%s4 + $0x10] sm:$0xff]
    %v112 = vld [vmem:[%s4 + $0x18] sm:$0xff]
    %114 = vset.pattern.permute.xlu0 0
    %115 = vperm.xlu0 %114, %v109
    %v116 = vpop.permute.xlu0 %115
    %119 = vset.pattern.permute.xlu0 0
    %120 = vperm.xlu0 %119, %v110
    %v121 = vpop.permute.xlu0 %120
    %124 = vset.pattern.permute.xlu0 0
    %125 = vperm.xlu0 %124, %v111
    %v126 = vpop.permute.xlu0 %125
    %129 = vset.pattern.permute.xlu0 0
    %130 = vperm.xlu0 %129, %v112
    %v131 = vpop.permute.xlu0 %130
    %v133 = vadd.f32 %v105, %v116
    %v134 = vadd.f32 %v106, %v121
    %v135 = vadd.f32 %v107, %v126
    %v136 = vadd.f32 %v108, %v131
    %v137 = vtanh.pop %v133
    %v138 = vtanh.pop %v134
    %v139 = vtanh.pop %v135
    %v140 = vtanh.pop %v136
    %v141 = vld [vmem:[%s5] sm:$0xff]
    %v142 = vld [vmem:[%s5 + $0x8] sm:$0xff]
    %v143 = vld [vmem:[%s5 + $0x10] sm:$0xff]
    %v144 = vld [vmem:[%s5 + $0x18] sm:$0xff]
    %v145 = vld [vmem:[%s6] sm:$0xff]
    %v146 = vld [vmem:[%s6 + $0x8] sm:$0xff]
    %v147 = vld [vmem:[%s6 + $0x10] sm:$0xff]
    %v148 = vld [vmem:[%s6 + $0x18] sm:$0xff]
    %150 = vset.pattern.permute.xlu0 0
    %151 = vperm.xlu0 %150, %v145
    %v152 = vpop.permute.xlu0 %151
    %155 = vset.pattern.permute.xlu0 0
    %156 = vperm.xlu0 %155, %v146
    %v157 = vpop.permute.xlu0 %156
    %160 = vset.pattern.permute.xlu0 0
    %161 = vperm.xlu0 %160, %v147
    %v162 = vpop.permute.xlu0 %161
    %165 = vset.pattern.permute.xlu0 0
    %166 = vperm.xlu0 %165, %v148
    %v167 = vpop.permute.xlu0 %166
    %vm169 = vcmask 261120
    %v171 = vsel %vm169, %v141, 0
    %v174 = vsel %vm169, %v142, 0
    %v177 = vsel %vm169, %v143, 0
    %v180 = vsel %vm169, %v144, 0
    %182 = vmatpush.msra.mxu0 0.0
    %183 = vmatpush.msra.mxu0 0.0
    %184 = vmatpush.msra.mxu0 0.0
    %185 = vmatpush.msra.mxu0 0.0
    %186 = vmatpush.msra.mxu0 0.0
    %187 = vmatpush.msra.mxu0 0.0
    %188 = vmatpush.msra.mxu0 0.0
    %189 = vmatpush.msra.mxu0 0.0
    %190 = vmatpush.msra.mxu0 0.0
    %191 = vmatpush.msra.mxu0 0.0
    %192 = vmatpush.msra.mxu0 0.0
    %193 = vmatpush.msra.mxu0 0.0
    %194 = vmatpush.msra.mxu0 %v140
    %195 = vmatpush.msra.mxu0 %v139
    %196 = vmatpush.msra.mxu0 %v138
    %197 = vmatpush.msra.mxu0 %v137
    %198 = vmatmul.f32.gmra.mxu0 %v171
    %v199 = vpop.f32.mrf.mxu0
    %v200 = vadd.f32 %v152, %v199
    %201 = vmatmul.f32.gmra.mxu0 %v174
    %v202 = vpop.f32.mrf.mxu0
    %v203 = vadd.f32 %v157, %v202
    %204 = vmatmul.f32.gmra.mxu0 %v177
    %v205 = vpop.f32.mrf.mxu0
    %v206 = vadd.f32 %v162, %v205
    %207 = vmatmul.f32.gmra.mxu0 %v180
    %v208 = vpop.f32.mrf.mxu0
    %v209 = vadd.f32 %v167, %v208
    %210 = vdwg.mxu0
    %v211 = vtanh.pop %v200
    %v212 = vtanh.pop %v203
    %v213 = vtanh.pop %v206
    %v214 = vtanh.pop %v209
    %v215 = vld [vmem:[%s7] sm:$0xff]
    %v216 = vld [vmem:[%s7 + $0x8] sm:$0xff]
    %v217 = vld [vmem:[%s7 + $0x10] sm:$0xff]
    %v218 = vld [vmem:[%s7 + $0x18] sm:$0xff]
    %v219 = vld [vmem:[%s8] sm:$0xff]
    %v220 = vld [vmem:[%s8 + $0x8] sm:$0xff]
    %v221 = vld [vmem:[%s8 + $0x10] sm:$0xff]
    %v222 = vld [vmem:[%s8 + $0x18] sm:$0xff]
    %224 = vset.pattern.permute.xlu0 0
    %225 = vperm.xlu0 %224, %v219
    %v226 = vpop.permute.xlu0 %225
    %229 = vset.pattern.permute.xlu0 0
    %230 = vperm.xlu0 %229, %v220
    %v231 = vpop.permute.xlu0 %230
    %234 = vset.pattern.permute.xlu0 0
    %235 = vperm.xlu0 %234, %v221
    %v236 = vpop.permute.xlu0 %235
    %239 = vset.pattern.permute.xlu0 0
    %240 = vperm.xlu0 %239, %v222
    %v241 = vpop.permute.xlu0 %240
    %v244 = vsel %vm169, %v215, 0
    %v247 = vsel %vm169, %v216, 0
    %v250 = vsel %vm169, %v217, 0
    %v253 = vsel %vm169, %v218, 0
    %255 = vmatpush.msra.mxu0 0.0
    %256 = vmatpush.msra.mxu0 0.0
    %257 = vmatpush.msra.mxu0 0.0
    %258 = vmatpush.msra.mxu0 0.0
    %259 = vmatpush.msra.mxu0 0.0
    %260 = vmatpush.msra.mxu0 0.0
    %261 = vmatpush.msra.mxu0 0.0
    %262 = vmatpush.msra.mxu0 0.0
    %263 = vmatpush.msra.mxu0 0.0
    %264 = vmatpush.msra.mxu0 0.0
    %265 = vmatpush.msra.mxu0 0.0
    %266 = vmatpush.msra.mxu0 0.0
    %267 = vmatpush.msra.mxu0 %v214
    %268 = vmatpush.msra.mxu0 %v213
    %269 = vmatpush.msra.mxu0 %v212
    %270 = vmatpush.msra.mxu0 %v211
    %271 = vmatmul.f32.gmra.mxu0 %v244
    %v272 = vpop.f32.mrf.mxu0
    %v273 = vadd.f32 %v226, %v272
    %274 = vmatmul.f32.gmra.mxu0 %v247
    %v275 = vpop.f32.mrf.mxu0
    %v276 = vadd.f32 %v231, %v275
    %277 = vmatmul.f32.gmra.mxu0 %v250
    %v278 = vpop.f32.mrf.mxu0
    %v279 = vadd.f32 %v236, %v278
    %280 = vmatmul.f32.gmra.mxu0 %v253
    %v281 = vpop.f32.mrf.mxu0
    %v282 = vadd.f32 %v241, %v281
    %283 = vdwg.mxu0
    %v284 = vtanh.pop %v273
    %v285 = vtanh.pop %v276
    %v286 = vtanh.pop %v279
    %v287 = vtanh.pop %v282
    %v288 = vld [vmem:[%s9] sm:$0x1]
    %v289 = vld [vmem:[#allocation2] sm:$0x1]
    %291 = vset.pattern.permute.xlu0 0
    %292 = vperm.xlu0 %291, %v289
    %v293 = vpop.permute.xlu0 %292
    %v295 = vperm.slane %v293, 0
    %v297 = vsel %vm169, %v288, 0
    %299 = vmatpush.msra.mxu0 0.0
    %300 = vmatpush.msra.mxu0 0.0
    %301 = vmatpush.msra.mxu0 0.0
    %302 = vmatpush.msra.mxu0 0.0
    %303 = vmatpush.msra.mxu0 0.0
    %304 = vmatpush.msra.mxu0 0.0
    %305 = vmatpush.msra.mxu0 0.0
    %306 = vmatpush.msra.mxu0 0.0
    %307 = vmatpush.msra.mxu0 0.0
    %308 = vmatpush.msra.mxu0 0.0
    %309 = vmatpush.msra.mxu0 0.0
    %310 = vmatpush.msra.mxu0 0.0
    %311 = vmatpush.msra.mxu0 %v287
    %312 = vmatpush.msra.mxu0 %v286
    %313 = vmatpush.msra.mxu0 %v285
    %314 = vmatpush.msra.mxu0 %v284
    %315 = vmatmul.f32.gmra.mxu0 %v297
    %v316 = vpop.f32.mrf.mxu0
    %v317 = vadd.f32 %v295, %v316
    %318 = vdwg.mxu0
    %319 = vst [vmem:[#allocation3] sm:$0x1] %v317
    // Predicated region
    $region46: #{tpu_custom_call.1} parent=1 // pred_check
      _
    $region47: #{tpu_custom_call.1} parent=1 // pred_check_branch
      %321 = sbr.rel (0) target = $region49
    $region48: #{tpu_custom_call.1} parent=1 // pred_region
      %323 = vsyncadd [#allocation4], 0
      %s325 = sshll.u32 [#allocation3], 4
      %s326 = int_to_ptr.vmem [resolvable:$true] %s325
      %s327 = sshll.u32 %s11, 4
      %s328 = int_to_ptr.hbm [resolvable:$true] %s327
      %330 = dma.vmem_to_hbm [thread:$0]  %s326, 16, %s328, [#allocation4]
    $region49: #{tpu_custom_call.1} parent=1 // pred_fallthru
      _
    // Predicated region
    $region50: #{tpu_custom_call.1} parent=1 // pred_check
      _
    $region51: #{tpu_custom_call.1} parent=1 // pred_check_branch
      %332 = sbr.rel (0) target = $region53
    $region52: #{tpu_custom_call.1} parent=1 // pred_region
      %334 = dma.done [#allocation4], 16
    $region53: #{tpu_custom_call.1} parent=1 // pred_fallthru
      _
    %335 = vsyncpa [#allocation4], 1

</llo_original>
